<compile_context>
chip_gen: v7x
topology: tpu7x:2x2x1
jax: 0.10.0
libtpu: 0.0.40
codegen_flags: <defaults>
</compile_context>

<pallas_src>
import functools

import jax
import jax.numpy as jnp
from jax.experimental import pallas as pl
from jax.experimental.pallas import tpu as pltpu


_MIB = 2**20

# Target total VMEM footprint of one fused-path grid step:
#   2x double-buffered input + 2x double-buffered output blocks (native dtype)
#   + ~4 block-sized f32 temporaries (xf, xf-mean, its square, gated product).
# 32 MiB keeps the fused path comfortably inside even v7x's 64 MiB physical
# VMEM while the per-step payload stays well past the ~2-3 MiB knee of the
# measured HBM-roofline tile sweep (and amortizes the ~0.35 us/step overhead).
_FUSED_FOOTPRINT_BUDGET = 32 * _MIB
# If even a single batch element exceeds this, switch to the two-pass path.
_FUSED_FOOTPRINT_CEILING = 40 * _MIB
# Per-step footprint target for the two-pass fallback kernels.
_SPLIT_FOOTPRINT_BUDGET = 24 * _MIB


def _round_up(n, m):
    return -(-n // m) * m


def _largest_divisor_leq(n, cap):
    cap = max(1, min(cap, n))
    for d in range(cap, 0, -1):
        if n % d == 0:
            return d
    return 1


def _vmem_limit(footprint_bytes):
    # Derived from the chosen block footprint + headroom; clamped so it stays
    # below v7x's 64 MiB physical VMEM and never regresses below v5e's needs.
    return int(min(48 * _MIB, max(32 * _MIB, footprint_bytes + 8 * _MIB)))


# ----------------------------------------------------------------------------
# Fused single-pass kernel: stats + 1x1 conv + sigmoid + gated residual apply.
# ----------------------------------------------------------------------------
def _cca_fused_kernel(x_ref, w_ref, b_ref, o_ref, *, inv_hw):
    # x_ref: (TB, C, HW) native dtype; w_ref: (C_in, C_out) pre-transposed;
    # b_ref: (1, C).
    xf = x_ref[...].astype(jnp.float32)

    # Two-pass mean/variance (same form as the reference; no cancellation).
    mean = jnp.sum(xf, axis=-1, keepdims=True) * inv_hw          # (TB, C, 1)
    d = xf - mean
    var = jnp.sum(d * d, axis=-1, keepdims=True) * inv_hw        # (TB, C, 1)
    y = (jnp.sqrt(var) + mean)[..., 0]                           # (TB, C)

    # 1x1 conv + bias on the tiny (TB, C) stats.  Residual folded into the
    # gate: x*sigmoid(y) + x == x*(sigmoid(y) + 1).
    w = w_ref[...].astype(jnp.float32)
    y = jnp.dot(y, w, preferred_element_type=jnp.float32)
    y = y + b_ref[...].astype(jnp.float32)
    gate = 1.0 / (1.0 + jnp.exp(-y)) + 1.0                        # (TB, C)

    # Multiply in f32 (xf already resident), single cast on the way out.
    o_ref[...] = (xf * gate[..., None]).astype(o_ref.dtype)


def _cca_fused(x_flat, w_t, bias2d, per_batch_bytes):
    B, C, HW = x_flat.shape

    # Largest batch tile that (a) fits the footprint budget and (b) leaves at
    # least two grid steps when B >= 2 (megacore on v7x, DMA/compute overlap).
    cap = max(1, _FUSED_FOOTPRINT_BUDGET // per_batch_bytes)
    if B >= 2:
        cap = min(cap, B // 2)
    tb = _largest_divisor_leq(B, cap)
    footprint = tb * per_batch_bytes

    kernel = functools.partial(_cca_fused_kernel, inv_hw=1.0 / HW)
    return pl.pallas_call(
        kernel,
        out_shape=jax.ShapeDtypeStruct((B, C, HW), x_flat.dtype),
        grid=(B // tb,),
        in_specs=[
            pl.BlockSpec((tb, C, HW), lambda i: (i, 0, 0)),
            pl.BlockSpec((C, C), lambda i: (0, 0)),
            pl.BlockSpec((1, C), lambda i: (0, 0)),
        ],
        out_specs=pl.BlockSpec((tb, C, HW), lambda i: (i, 0, 0)),
        compiler_params=pltpu.CompilerParams(
            dimension_semantics=("parallel",),
            vmem_limit_bytes=_vmem_limit(footprint),
        ),
    )(x_flat, w_t, bias2d)


# ----------------------------------------------------------------------------
# Two-pass fallback for blocks too large to hold a whole (1, C, HW) slab.
# ----------------------------------------------------------------------------
def _stats_kernel(x_ref, s1_ref, s2_ref, *, hw, thw):
    h = pl.program_id(1)

    @pl.when(h == 0)
    def _():
        s1_ref[...] = jnp.zeros_like(s1_ref)
        s2_ref[...] = jnp.zeros_like(s2_ref)

    xf = x_ref[...].astype(jnp.float32)                           # (1, C, THW)
    if hw % thw != 0:
        # Mask the out-of-range lanes of the trailing partial tile.
        lane = jax.lax.broadcasted_iota(jnp.int32, xf.shape, 2) + h * thw
        xf = jnp.where(lane < hw, xf, 0.0)
    s1_ref[...] += jnp.sum(xf, axis=-1, keepdims=True)
    s2_ref[...] += jnp.sum(xf * xf, axis=-1, keepdims=True)


def _apply_kernel(x_ref, g_ref, o_ref):
    o_ref[...] = (
        x_ref[...].astype(jnp.float32) * g_ref[...].astype(jnp.float32)
    ).astype(o_ref.dtype)


def _cca_two_pass(x_flat, w_t, bias2d):
    B, C, HW = x_flat.shape
    itemsize = jnp.dtype(x_flat.dtype).itemsize
    sublane = max(8, 32 // itemsize)
    c_pad = _round_up(C, sublane)
    hw_pad = _round_up(HW, 128)

    # HW tile: multiple of 128 so the larger of the two kernels' per-step
    # footprints (stats: 2x in native + 2 f32 temps; apply: 2x in + 2x out
    # native + 1 f32 temp) stays under the split budget.
    bytes_per_128 = c_pad * 128 * max(2 * itemsize + 2 * 4, 4 * itemsize + 4)
    max_chunks = max(1, _SPLIT_FOOTPRINT_BUDGET // bytes_per_128)
    thw = min(max_chunks * 128, hw_pad)
    if thw >= HW:
        thw = HW                       # full last dim: no partial blocks
    n_h = pl.cdiv(HW, thw)
    footprint = bytes_per_128 * (_round_up(thw, 128) // 128)
    vmem_limit = _vmem_limit(footprint)

    # Pass 1: per-(b, c) sum and sum-of-squares; HW is the innermost
    # ("arbitrary") reduction axis with the output blocks resident across it.
    s1, s2 = pl.pallas_call(
        functools.partial(_stats_kernel, hw=HW, thw=thw),
        out_shape=(
            jax.ShapeDtypeStruct((B, C, 1), jnp.float32),
            jax.ShapeDtypeStruct((B, C, 1), jnp.float32),
        ),
        grid=(B, n_h),
        in_specs=[pl.BlockSpec((1, C, thw), lambda b, h: (b, 0, h))],
        out_specs=(
            pl.BlockSpec((1, C, 1), lambda b, h: (b, 0, 0)),
            pl.BlockSpec((1, C, 1), lambda b, h: (b, 0, 0)),
        ),
        compiler_params=pltpu.CompilerParams(
            dimension_semantics=("parallel", "arbitrary"),
            vmem_limit_bytes=vmem_limit,
        ),
    )(x_flat)

    # Tiny per-(b, c) gate in plain JAX (negligible vs the HBM traffic).
    inv_hw = 1.0 / HW
    mean = s1[..., 0] * inv_hw                                    # (B, C)
    # NOTE: one-pass variance (clamped) here; the fused path uses the exact
    # two-pass form.  Only reached for very large C*H*W.
    var = jnp.maximum(s2[..., 0] * inv_hw - mean * mean, 0.0)
    y = jnp.sqrt(var) + mean
    y = jnp.dot(y, w_t.astype(jnp.float32),
                preferred_element_type=jnp.float32)
    y = y + bias2d.astype(jnp.float32)
    gate = (jax.nn.sigmoid(y) + 1.0)[..., None]                   # (B, C, 1)

    # Pass 2: out = x * gate, tiled over (batch, HW).
    return pl.pallas_call(
        _apply_kernel,
        out_shape=jax.ShapeDtypeStruct((B, C, HW), x_flat.dtype),
        grid=(B, n_h),
        in_specs=[
            pl.BlockSpec((1, C, thw), lambda b, h: (b, 0, h)),
            pl.BlockSpec((1, C, 1), lambda b, h: (b, 0, 0)),
        ],
        out_specs=pl.BlockSpec((1, C, thw), lambda b, h: (b, 0, h)),
        compiler_params=pltpu.CompilerParams(
            dimension_semantics=("parallel", "parallel"),
            vmem_limit_bytes=vmem_limit,
        ),
    )(x_flat, gate)


# ----------------------------------------------------------------------------
# Public wrapper.
# ----------------------------------------------------------------------------
def cca_layer(x, weight, bias, *, force_two_pass=False):
    """x: (B, C, H, W) NCHW.  weight: (C_out, C_in) from Conv2d(C, C, 1)
    (kernel dims squeezed).  bias: (C,)."""
    B, C, H, W = x.shape
    HW = H * W

    x_flat = x.reshape(B, C, HW)            # free view; no padding
    w_t = jnp.transpose(weight)             # (C_in, C_out): no in-kernel .T
    bias2d = bias.reshape(1, C)

    itemsize = jnp.dtype(x.dtype).itemsize
    sublane = max(8, 32 // itemsize)        # sublane packing for sub-32-bit
    c_pad = _round_up(C, sublane)
    hw_pad = _round_up(HW, 128)
    # Fused-kernel VMEM footprint of one batch element: 2x in + 2x out
    # double-buffers (native dtype) + ~4 block-sized f32 temporaries.
    per_batch = c_pad * hw_pad * (4 * itemsize + 4 * 4)

    if force_two_pass or per_batch > _FUSED_FOOTPRINT_CEILING:
        out = _cca_two_pass(x_flat, w_t, bias2d)
    else:
        out = _cca_fused(x_flat, w_t, bias2d, per_batch)
    return out.reshape(B, C, H, W)          # free view


def cca_reference(x, weight, bias):
    """Pure-JAX reference mirroring the PyTorch forward."""
    B, C, H, W = x.shape
    xf = x.astype(jnp.float32)
    mean = jnp.mean(xf, axis=(2, 3), keepdims=True)               # (B,C,1,1)
    var = jnp.mean((xf - mean) ** 2, axis=(2, 3), keepdims=True)
    std = jnp.sqrt(var)
    y = std + mean                                                 # (B,C,1,1)
    y = jnp.einsum("oi,bijk->bojk", weight.astype(jnp.float32), y)
    y = y + bias.astype(jnp.float32).reshape(1, C, 1, 1)
    y = jax.nn.sigmoid(y)
    return (xf * y + xf).astype(x.dtype)


if __name__ == "__main__":
    key = jax.random.PRNGKey(0)
    kx, kw, kb = jax.random.split(key, 3)

    B, C, H, W = 2, 4, 16, 16
    x = jax.random.normal(kx, (B, C, H, W), dtype=jnp.float32)
    # Conv2d(channel, channel, 1, bias=True): weight (C, C, 1, 1) -> (C_out, C_in)
    weight = jax.random.normal(kw, (C, C), dtype=jnp.float32) * 0.1
    bias = jax.random.normal(kb, (C,), dtype=jnp.float32) * 0.1

    ref = cca_reference(x, weight, bias)

    # Fused single-pass path (the normal case).
    out = jax.block_until_ready(cca_layer(x, weight, bias))
    assert out.shape == (B, C, H, W)
    assert jnp.allclose(out, ref, atol=1e-4, rtol=1e-4), (
        f"fused max abs err {jnp.max(jnp.abs(out - ref))}"
    )

    # HW not a multiple of 128: no wrapper pad/slice; in-kernel masked tail.
    x_odd = jax.random.normal(kx, (B, C, 7, 7), dtype=jnp.float32)
    out_odd = jax.block_until_ready(cca_layer(x_odd, weight, bias))
    ref_odd = cca_reference(x_odd, weight, bias)
    assert jnp.allclose(out_odd, ref_odd, atol=1e-4, rtol=1e-4), (
        f"odd-HW max abs err {jnp.max(jnp.abs(out_odd - ref_odd))}"
    )

    # Two-pass fallback path (forced here at small shape to validate it).
    out_tp = jax.block_until_ready(cca_layer(x, weight, bias, force_two_pass=True))
    assert jnp.allclose(out_tp, ref, atol=1e-4, rtol=1e-4), (
        f"two-pass max abs err {jnp.max(jnp.abs(out_tp - ref))}"
    )

    print("KERNEL_OK")
</pallas_src>

<mosaic_0001>
module attributes {stable_mosaic.version = 11 : i64} {
  func.func @_cca_fused_kernel(%arg0: i32, %arg1: memref<1x4x256xf32, #tpu.memory_space<vmem>>, %arg2: memref<4x4xf32, #tpu.memory_space<vmem>>, %arg3: memref<1x4xf32, #tpu.memory_space<vmem>>, %arg4: memref<1x4x256xf32, #tpu.memory_space<vmem>>) attributes {dimension_semantics = [#tpu.dimension_semantics<parallel>], iteration_bounds = array<i64: 2>, scalar_prefetch = 0 : i64, scratch_operands = 0 : i64, tpu.core_type = #tpu.core_type<tc>, window_params = [{transform_indices = @transform_0, window_bounds = array<i64: 1, 4, 256>}, {pipeline_mode = #tpu.pipeline_mode<synchronous>, transform_indices = @transform_1, window_bounds = array<i64: 4, 4>}, {pipeline_mode = #tpu.pipeline_mode<synchronous>, transform_indices = @transform_2, window_bounds = array<i64: 1, 4>}, {transform_indices = @transform_3, window_bounds = array<i64: 1, 4, 256>}]} {
    %c0 = arith.constant 0 : index
    %c0_0 = arith.constant 0 : index
    %c0_1 = arith.constant 0 : index
    %0 = vector.load %arg1[%c0, %c0_0, %c0_1] : memref<1x4x256xf32, #tpu.memory_space<vmem>>, vector<1x4x256xf32>
    %cst = arith.constant dense<0.000000e+00> : vector<1x4xf32>
    %1 = vector.multi_reduction <add>, %0, %cst [2] : vector<1x4x256xf32> to vector<1x4xf32>
    %2 = vector.shape_cast %1 : vector<1x4xf32> to vector<1x4x1xf32>
    %cst_2 = arith.constant 3.906250e-03 : f32
    %3 = vector.broadcast %cst_2 : f32 to vector<1x4x1xf32>
    %4 = arith.mulf %2, %3 : vector<1x4x1xf32>
    %5 = vector.broadcast %4 : vector<1x4x1xf32> to vector<1x4x256xf32>
    %6 = arith.subf %0, %5 : vector<1x4x256xf32>
    %7 = arith.mulf %6, %6 : vector<1x4x256xf32>
    %cst_3 = arith.constant dense<0.000000e+00> : vector<1x4xf32>
    %8 = vector.multi_reduction <add>, %7, %cst_3 [2] : vector<1x4x256xf32> to vector<1x4xf32>
    %9 = vector.shape_cast %8 : vector<1x4xf32> to vector<1x4x1xf32>
    %cst_4 = arith.constant 3.906250e-03 : f32
    %10 = vector.broadcast %cst_4 : f32 to vector<1x4x1xf32>
    %11 = arith.mulf %9, %10 : vector<1x4x1xf32>
    %12 = math.sqrt %11 : vector<1x4x1xf32>
    %13 = arith.addf %12, %4 : vector<1x4x1xf32>
    %14 = vector.shape_cast %13 : vector<1x4x1xf32> to vector<1x4xf32>
    %c0_5 = arith.constant 0 : index
    %c0_6 = arith.constant 0 : index
    %15 = vector.load %arg2[%c0_5, %c0_6] : memref<4x4xf32, #tpu.memory_space<vmem>>, vector<4x4xf32>
    %cst_7 = arith.constant dense<0.000000e+00> : vector<1x4xf32>
    %16 = tpu.matmul %14, %15, %cst_7 {dimension_numbers = #tpu.dot_dimension_numbers<[1], [0], [0], [1], [0, 0, 1, 1], [], []>} : vector<1x4xf32>, vector<4x4xf32>, vector<1x4xf32> -> vector<1x4xf32>
    %c0_8 = arith.constant 0 : index
    %c0_9 = arith.constant 0 : index
    %17 = vector.load %arg3[%c0_8, %c0_9] : memref<1x4xf32, #tpu.memory_space<vmem>>, vector<1x4xf32>
    %18 = arith.addf %16, %17 : vector<1x4xf32>
    %cst_10 = arith.constant 0.000000e+00 : f32
    %19 = vector.broadcast %cst_10 : f32 to vector<1x4xf32>
    %20 = arith.subf %19, %18 : vector<1x4xf32>
    %21 = math.exp %20 : vector<1x4xf32>
    %cst_11 = arith.constant 1.000000e+00 : f32
    %22 = vector.broadcast %cst_11 : f32 to vector<1x4xf32>
    %23 = arith.addf %22, %21 : vector<1x4xf32>
    %cst_12 = arith.constant 1.000000e+00 : f32
    %24 = vector.broadcast %cst_12 : f32 to vector<1x4xf32>
    %25 = arith.divf %24, %23 : vector<1x4xf32>
    %cst_13 = arith.constant 1.000000e+00 : f32
    %26 = vector.broadcast %cst_13 : f32 to vector<1x4xf32>
    %27 = arith.addf %25, %26 : vector<1x4xf32>
    %28 = vector.shape_cast %27 : vector<1x4xf32> to vector<1x4x1xf32>
    %29 = vector.broadcast %28 : vector<1x4x1xf32> to vector<1x4x256xf32>
    %30 = arith.mulf %0, %29 : vector<1x4x256xf32>
    %c0_14 = arith.constant 0 : index
    %c0_15 = arith.constant 0 : index
    %c0_16 = arith.constant 0 : index
    %31 = vector.load %arg4[%c0_14, %c0_15, %c0_16] : memref<1x4x256xf32, #tpu.memory_space<vmem>>, vector<1x4x256xf32>
    tpu.vector_store %arg4[%c0_14, %c0_15, %c0_16], %30 {strides = array<i32>} : memref<1x4x256xf32, #tpu.memory_space<vmem>>, vector<1x4x256xf32>,
    return
  }
  func.func @transform_0(%arg0: i32) -> (i32, i32, i32) {
    %c0_i32 = arith.constant 0 : i32
    %c0_i32_0 = arith.constant 0 : i32
    %c0_i32_1 = arith.constant 0 : i32
    return %arg0, %c0_i32, %c0_i32_0 : i32, i32, i32
  }
  func.func @transform_1(%arg0: i32) -> (i32, i32) {
    %c0_i32 = arith.constant 0 : i32
    %c0_i32_0 = arith.constant 0 : i32
    %c0_i32_1 = arith.constant 0 : i32
    return %c0_i32, %c0_i32_0 : i32, i32
  }
  func.func @transform_2(%arg0: i32) -> (i32, i32) {
    %c0_i32 = arith.constant 0 : i32
    %c0_i32_0 = arith.constant 0 : i32
    %c0_i32_1 = arith.constant 0 : i32
    return %c0_i32, %c0_i32_0 : i32, i32
  }
  func.func @transform_3(%arg0: i32) -> (i32, i32, i32) {
    %c0_i32 = arith.constant 0 : i32
    %c0_i32_0 = arith.constant 0 : i32
    %c0_i32_1 = arith.constant 0 : i32
    return %arg0, %c0_i32, %c0_i32_0 : i32, i32, i32
  }
}

</mosaic_0001>

<llo_original>
// kernel: tpu_custom_call.1
$region0: #{tpu_custom_call.1}
  #allocation0 [shape = 'u32[]', space=smem, size = 0x4, offset = 0x4, fixed_abs, tag = 'smem constant byte address 0x4 - core index']
  #allocation1 [shape = 'u32[144,128]{1,0:T(1,128)}', space=vmem, size = 0x12000, scoped, tag = 'internal scratch']
  %s0 = inlined_call_operand.hbm [shape: f32[2,4,256], index: 0, kind: input, shape index: {}]
  %s1 = inlined_call_operand.hbm [shape: f32[4,4], index: 1, kind: input, shape index: {}]
  %s2 = inlined_call_operand.vmem [shape: f32[1,4], index: 2, kind: input, shape index: {}]
  %s3 = inlined_call_operand.hbm [shape: f32[2,4,256], index: 3, kind: output, shape index: {}]
  %s4 = sld [smem:[#allocation0]]
  $region53: #{tpu_custom_call.1} parent=0
    _
  %s6 = ssub.s32 1, %s4
  %s7 = scalar_select 0, %s6, %s4
  $region1: #{tpu_custom_call.1} parent=0
    #allocation2 [shape = 'u8[8192]{0}', space=vmem, size = 0x2000, scoped, tag = 'input window, operand 0']
    #allocation3 [shape = 's32[2]{0}', space=sflag, size = 0x8, scoped, tag = 'scoped memory for tpu_custom_call.1']
    #allocation4 [shape = 's32[2]{0}', space=sflag, size = 0x8, scoped, tag = 'scoped memory for tpu_custom_call.1']
    #allocation5 [shape = 'u8[2048]{0}', space=vmem, size = 0x800, scoped, tag = 'input window, operand 1, single buffered']
    #allocation6 [shape = 's32[1]{0}', space=sflag, size = 0x4, scoped, tag = 'scoped memory for tpu_custom_call.1']
    #allocation7 [shape = 'u8[8192]{0}', space=vmem, size = 0x2000, scoped, tag = 'output window, operand 0']
    %8 = vsyncpa [#allocation3], 0
    %s9 = scalar_lea.sflag [#allocation3], 1
    %10 = vsyncpa %s9, 0
    %11 = vsyncpa [#allocation6], 0
    %12 = vsyncpa [#allocation4], 0
    %s13 = scalar_lea.sflag [#allocation4], 1
    %14 = vsyncpa %s13, 0
    loop: start=0, step=1, limit=4
    $region2: #{tpu_custom_call.1} parent=1 // loop_pre_header
      _
    $region3: #{tpu_custom_call.1} parent=1 // loop_header
      %s16 = sphi 0, %s20
      %p17 = scmp.ge.s32.totalorder %s16, 4
      %s26 = sphi 0, %s28
      %s29 = sphi 0, %s26
      %s30 = sphi 0, %s29
      %s46 = sphi 0, %s30
      %s50 = sphi 0, %s50
      %s52 = sphi 0, %s50
      %s53 = sphi 0, %s52
      %s67 = sphi 0, %s53
      %s71 = sphi 0, %s71
      %s73 = sphi 0, %s71
      %s74 = sphi 0, %s73
      %s88 = sphi 0, %s74
      %s94 = sphi 0, %s96
      %s97 = sphi 0, %s94
      %s98 = sphi 0, %s97
      %s114 = sphi 0, %s98
    $region4: #{tpu_custom_call.1} parent=1 // loop_header_branch
      %19 = sbr.rel (%p17) target = $region8
    $region5: #{tpu_custom_call.1} parent=1 // loop_body
      %s21 = ssub.s32 %s16, 1
      %s22 = ssub.s32 %s16, 2
      %s23 = sadd.s32 %s16, 1
      %s24 = ssub.s32 %s16, %s23
      %p25 = scmp.eq.s32.totalorder %s24, 0
      %s27 = sadd.s32 %s26, 1
      %s28 = scalar_select %p25, %s26, %s27
      %p31 = pneg %p25
      %p32 = scmp.eq.s32.totalorder %s16, 1
      %p33 = por %p31, %p32
      %p34 = scmp.ne.s32.totalorder %s26, %s29
      %p35 = scmp.eq.s32.totalorder %s16, 0
      %p36 = por %p34, %p35
      %p37 = scmp.ne.s32.totalorder %s26, %s29
      %p38 = scmp.eq.s32.totalorder %s21, 1
      %p39 = por %p37, %p38
      %p40 = scmp.ne.s32.totalorder %s29, %s30
      %p41 = scmp.eq.s32.totalorder %s21, 0
      %p42 = por %p40, %p41
      %p43 = scmp.ne.s32.totalorder %s29, %s30
      %p44 = scmp.eq.s32.totalorder %s22, 1
      %p45 = por %p43, %p44
      %p47 = scmp.ne.s32.totalorder %s30, %s46
      %p48 = scmp.eq.s32.totalorder %s22, 0
      %p49 = por %p47, %p48
      %s51 = sadd.s32 %s50, 1
      %p54 = scmp.eq.s32.totalorder %s16, 1
      %p55 = scmp.ne.s32.totalorder %s50, %s52
      %p56 = scmp.eq.s32.totalorder %s16, 0
      %p57 = por %p55, %p56
      %p58 = scmp.ne.s32.totalorder %s50, %s52
      %p59 = scmp.eq.s32.totalorder %s21, 1
      %p60 = por %p58, %p59
      %p61 = scmp.ne.s32.totalorder %s52, %s53
      %p62 = scmp.eq.s32.totalorder %s21, 0
      %p63 = por %p61, %p62
      %p64 = scmp.ne.s32.totalorder %s52, %s53
      %p65 = scmp.eq.s32.totalorder %s22, 1
      %p66 = por %p64, %p65
      %p68 = scmp.ne.s32.totalorder %s53, %s67
      %p69 = scmp.eq.s32.totalorder %s22, 0
      %p70 = por %p68, %p69
      %s72 = sadd.s32 %s71, 1
      %p75 = scmp.eq.s32.totalorder %s16, 1
      %p76 = scmp.ne.s32.totalorder %s71, %s73
      %p77 = scmp.eq.s32.totalorder %s16, 0
      %p78 = por %p76, %p77
      %p79 = scmp.ne.s32.totalorder %s71, %s73
      %p80 = scmp.eq.s32.totalorder %s21, 1
      %p81 = por %p79, %p80
      %p82 = scmp.ne.s32.totalorder %s73, %s74
      %p83 = scmp.eq.s32.totalorder %s21, 0
      %p84 = por %p82, %p83
      %p85 = scmp.ne.s32.totalorder %s73, %s74
      %p86 = scmp.eq.s32.totalorder %s22, 1
      %p87 = por %p85, %p86
      %p89 = scmp.ne.s32.totalorder %s74, %s88
      %p90 = scmp.eq.s32.totalorder %s22, 0
      %p91 = por %p89, %p90
      %s92 = ssub.s32 %s16, %s23
      %p93 = scmp.eq.s32.totalorder %s92, 0
      %s95 = sadd.s32 %s94, 1
      %s96 = scalar_select %p93, %s94, %s95
      %p99 = pneg %p93
      %p100 = scmp.eq.s32.totalorder %s16, 1
      %p101 = por %p99, %p100
      %p102 = scmp.ne.s32.totalorder %s94, %s97
      %p103 = scmp.eq.s32.totalorder %s16, 0
      %p104 = por %p102, %p103
      %p105 = scmp.ne.s32.totalorder %s94, %s97
      %p106 = scmp.eq.s32.totalorder %s21, 1
      %p107 = por %p105, %p106
      %p108 = scmp.ne.s32.totalorder %s97, %s98
      %p109 = scmp.eq.s32.totalorder %s21, 0
      %p110 = por %p108, %p109
      %p111 = scmp.ne.s32.totalorder %s97, %s98
      %p112 = scmp.eq.s32.totalorder %s22, 1
      %p113 = por %p111, %p112
      %p115 = scmp.ne.s32.totalorder %s98, %s114
      %p116 = scmp.eq.s32.totalorder %s22, 0
      %p117 = por %p115, %p116
      %p118 = scmp.le.s32.totalorder 1, %s16
      %p119 = scmp.lt.s32.totalorder %s16, 3
      %p120 = pnand %p118, %p119
      %p121 = pneg %p120
      // Predicated region
      $region9: #{tpu_custom_call.1} parent=5 // pred_check
        _
      $region10: #{tpu_custom_call.1} parent=5 // pred_check_branch
        %123 = sbr.rel (%p120) target = $region12
      $region11: #{tpu_custom_call.1} parent=5 // pred_region
        %s124 = ssub.s32 %s16, 1
        // Predicated region
        $region13: #{tpu_custom_call.1} parent=11 // pred_check
          %p125 = pneg %p63
        $region14: #{tpu_custom_call.1} parent=11 // pred_check_branch
          %127 = sbr.rel (%p125) target = $region16
        $region15: #{tpu_custom_call.1} parent=11 // pred_region
          %s129 = ssub.s32 64, 64
          %130 = vsyncadd [#allocation6], %s129
          %s132 = sshll.u32 [#allocation5], 4
          %s133 = int_to_ptr.vmem [resolvable:$true] %s132
          %135 = dma.hbm_to_vmem [thread:$0]  %s1, 64, %s133, [#allocation6]
        $region16: #{tpu_custom_call.1} parent=11 // pred_fallthru
          _
        // Predicated region
        $region17: #{tpu_custom_call.1} parent=11 // pred_check
          %p136 = pneg %p84
        $region18: #{tpu_custom_call.1} parent=11 // pred_check_branch
          %138 = sbr.rel (%p136) target = $region20
        $region19: #{tpu_custom_call.1} parent=11 // pred_region
          _
        $region20: #{tpu_custom_call.1} parent=11 // pred_fallthru
          _
      $region12: #{tpu_custom_call.1} parent=5 // pred_fallthru
        _
      %p139 = scmp.lt.s32.totalorder %s16, 2
      // Predicated region
      $region21: #{tpu_custom_call.1} parent=5 // pred_check
        %p140 = pneg %p139
      $region22: #{tpu_custom_call.1} parent=5 // pred_check_branch
        %142 = sbr.rel (%p140) target = $region24
      $region23: #{tpu_custom_call.1} parent=5 // pred_region
        // Predicated region
        $region25: #{tpu_custom_call.1} parent=23 // pred_check
          %p143 = pneg %p36
        $region26: #{tpu_custom_call.1} parent=23 // pred_check_branch
          %145 = sbr.rel (%p143) target = $region28
        $region27: #{tpu_custom_call.1} parent=23 // pred_region
          %s146 = sand.u32 %s26, 1
          %s147 = scalar_lea.sflag [#allocation3], %s146
          %s148 = sand.u32 %s26, 1
          %s149 = smul.addr %s148, 8
          %s150 = scalar_lea.vmem [#allocation2], %s149
          %s152 = ssub.s32 128, 128
          %153 = vsyncadd %s147, %s152
          %s154 = smul.addr %s16, 2
          %s155 = smul.addr %s154, 64
          %s156 = scalar_lea.hbm %s0, %s155
          %s158 = sshll.u32 %s150, 4
          %s159 = int_to_ptr.vmem [resolvable:$true] %s158
          %161 = dma.hbm_to_vmem [thread:$0]  %s156, 128, %s159, %s147
        $region28: #{tpu_custom_call.1} parent=23 // pred_fallthru
          _
      $region24: #{tpu_custom_call.1} parent=5 // pred_fallthru
        _
      %p162 = scmp.le.s32.totalorder 1, %s16
      %p163 = scmp.lt.s32.totalorder %s16, 3
      %p164 = pnand %p162, %p163
      %p165 = pneg %p164
      // Predicated region
      $region29: #{tpu_custom_call.1} parent=5 // pred_check
        _
      $region30: #{tpu_custom_call.1} parent=5 // pred_check_branch
        %167 = sbr.rel (%p164) target = $region32
      $region31: #{tpu_custom_call.1} parent=5 // pred_region
        %s168 = ssub.s32 %s16, 1
        %s169 = sand.u32 %s29, 1
        %s170 = scalar_lea.sflag [#allocation3], %s169
        %s171 = sand.u32 %s29, 1
        %s172 = smul.addr %s171, 8
        %s173 = scalar_lea.vmem [#allocation2], %s172
        // Predicated region
        $region33: #{tpu_custom_call.1} parent=31 // pred_check
          %p174 = pneg %p42
        $region34: #{tpu_custom_call.1} parent=31 // pred_check_branch
          %176 = sbr.rel (%p174) target = $region36
        $region35: #{tpu_custom_call.1} parent=31 // pred_region
          %177 = dma.done %s170, 128
        $region36: #{tpu_custom_call.1} parent=31 // pred_fallthru
          _
        // Predicated region
        $region37: #{tpu_custom_call.1} parent=31 // pred_check
          %p178 = pneg %p63
        $region38: #{tpu_custom_call.1} parent=31 // pred_check_branch
          %180 = sbr.rel (%p178) target = $region40
        $region39: #{tpu_custom_call.1} parent=31 // pred_region
          %181 = dma.done [#allocation6], 64
        $region40: #{tpu_custom_call.1} parent=31 // pred_fallthru
          _
        %s182 = sand.u32 %s29, 1
        %s183 = scalar_lea.sflag [#allocation3], %s182
        %s184 = sand.u32 %s29, 1
        %s185 = smul.addr %s184, 8
        %s186 = scalar_lea.vmem [#allocation2], %s185
        %p187 = pneg %p42
        %p188 = pneg %p39
        %p189 = pneg %p63
        %p190 = pneg %p60
        %p191 = pneg %p84
        %p192 = pneg %p81
        %p193 = pneg %p110
        %p194 = pneg %p107
        %s195 = sand.u32 %s97, 1
        %s196 = scalar_lea.sflag [#allocation4], %s195
        %s197 = sand.u32 %s97, 1
        %s198 = smul.addr %s197, 8
        %s199 = scalar_lea.vmem [#allocation7], %s198
        %v200 = vld [vmem:[%s173] sm:$0xff]
        %v202 = vcombine.high %v200, %v200
        %vm204 = vcmask 1043456
        %v205 = vsel %vm204, %v200, 0.0
        %v206 = vsel %vm204, %v202, 0.0
        %v207 = vadd.f32 %v205, %v206
        %208 = vadd.xlane.f32.xlu0 %v207
        %v209 = vpop.xlane.xlu0 %208
        %v210 = vmul.f32 %v209, 0.00390625
        %v213 = vunpack.c.l.s4 839922192
        %v214 = vunpack.c.0.s8 %v213
        %v215 = vlaneseq
        %v216 = vshrl.u32 %v215, 7
        %v217 = vsub.s32 %v214, %v216
        %v218 = vrot.slane %v210, %v217
        %v220 = vsub.f32 %v200, %v218
        %v221 = vmul.f32 %v220, %v220
        %v223 = vcombine.high %v221, %v221
        %v225 = vsel %vm204, %v221, 0.0
        %v226 = vsel %vm204, %v223, 0.0
        %v227 = vadd.f32 %v225, %v226
        %228 = vadd.xlane.f32.xlu0 %v227
        %v229 = vpop.xlane.xlu0 %228
        %v230 = vmul.f32 %v229, 0.00390625
        %v231 = vrsqrt.pop %v230
        %v232 = vmul.f32 %v230, %v231
        %vm233 = vcmp.eq.f32.partialorder %v230, inf
        %v234 = vsel %vm233, %v230, %v232
        %vm235 = vcmp.eq.f32.partialorder %v230, 0.0
        %v236 = vand.u32 %v230, 2147483648
        %v237 = vsel %vm235, %v236, %v234
        %v238 = vadd.f32 %v237, %v210
        %v239 = vld [vmem:[#allocation5] sm:$0xf]
        %v240 = vld [vmem:[%s2] sm:$0x1]
        %v242 = vlaneseq
        %v243 = vand.u32 %v242, 127
        %v244 = vlaneseq
        %v245 = vshrl.u32 %v244, 7
        %v246 = vsub.s32 %v243, %v245
        %v247 = vrot.slane %v238, %v246
        %vm248 = vcmask 31744
        %v249 = vsel %vm248, %v247, 0
        %v252 = vsel %vm204, %v239, 0
        %254 = vmatprep.subr.mxu0 0.0
        %255 = vmatpush1.msra.mxu0 %v252
        %256 = vmatprep.subr.mxu0 0.0
        %257 = vmatpush1.msra.mxu0 0.0
        %258 = vmatprep.subr.mxu0 0.0
        %259 = vmatpush1.msra.mxu0 0.0
        %260 = vmatprep.subr.mxu0 0.0
        %261 = vmatpush1.msra.mxu0 0.0
        %262 = vmatprep.subr.mxu0 0.0
        %263 = vmatpush1.msra.mxu0 0.0
        %264 = vmatprep.subr.mxu0 0.0
        %265 = vmatpush1.msra.mxu0 0.0
        %266 = vmatprep.subr.mxu0 0.0
        %267 = vmatpush1.msra.mxu0 0.0
        %268 = vmatprep.subr.mxu0 0.0
        %269 = vmatpush1.msra.mxu0 0.0
        %270 = vmatprep.subr.mxu0 0.0
        %271 = vmatpush1.msra.mxu0 0.0
        %272 = vmatprep.subr.mxu0 0.0
        %273 = vmatpush1.msra.mxu0 0.0
        %274 = vmatprep.subr.mxu0 0.0
        %275 = vmatpush1.msra.mxu0 0.0
        %276 = vmatprep.subr.mxu0 0.0
        %277 = vmatpush1.msra.mxu0 0.0
        %278 = vmatprep.subr.mxu0 0.0
        %279 = vmatpush1.msra.mxu0 0.0
        %280 = vmatprep.subr.mxu0 0.0
        %281 = vmatpush1.msra.mxu0 0.0
        %282 = vmatprep.subr.mxu0 0.0
        %283 = vmatpush1.msra.mxu0 0.0
        %284 = vmatprep.subr.mxu0 0.0
        %285 = vmatpush1.msra.mxu0 0.0
        %286 = vmatprep.subr.mxu0 0.0
        %287 = vmatpush1.msra.mxu0 0.0
        %288 = vmatprep.subr.mxu0 0.0
        %289 = vmatpush1.msra.mxu0 0.0
        %290 = vmatprep.subr.mxu0 0.0
        %291 = vmatpush1.msra.mxu0 0.0
        %292 = vmatprep.subr.mxu0 0.0
        %293 = vmatpush1.msra.mxu0 0.0
        %294 = vmatprep.subr.mxu0 0.0
        %295 = vmatpush1.msra.mxu0 0.0
        %296 = vmatprep.subr.mxu0 0.0
        %297 = vmatpush1.msra.mxu0 0.0
        %298 = vmatprep.subr.mxu0 0.0
        %299 = vmatpush1.msra.mxu0 0.0
        %300 = vmatprep.subr.mxu0 0.0
        %301 = vmatpush1.msra.mxu0 0.0
        %302 = vmatprep.subr.mxu0 0.0
        %303 = vmatpush1.msra.mxu0 0.0
        %304 = vmatprep.subr.mxu0 0.0
        %305 = vmatpush1.msra.mxu0 0.0
        %306 = vmatprep.subr.mxu0 0.0
        %307 = vmatpush1.msra.mxu0 0.0
        %308 = vmatprep.subr.mxu0 0.0
        %309 = vmatpush1.msra.mxu0 0.0
        %310 = vmatprep.subr.mxu0 0.0
        %311 = vmatpush1.msra.mxu0 0.0
        %312 = vmatprep.subr.mxu0 0.0
        %313 = vmatpush1.msra.mxu0 0.0
        %314 = vmatprep.subr.mxu0 0.0
        %315 = vmatpush1.msra.mxu0 0.0
        %316 = vmatprep.subr.mxu0 0.0
        %317 = vmatpush1.msra.mxu0 0.0
        %318 = vmatprep.mubr.f32.mxu0 0.0
        %319 = vmatmul.mubr.f32.gmra.mrb[0].mxu0 %v249
        %v320 = vpop.f32.mrb[0].mxu0
        %v321 = vadd.f32 %v240, %v320
        %v322 = vpop.f32.mrb[0].mxu0
        %323 = vdwg.mxu0
        %v324 = vsub.f32 0.0, %v321
        %v325 = vmul.f32 %v324, 1.442695
        %v326 = vpow.pop %v325
        %v327 = vadd.f32 %v326, 1.0
        %v328 = vrcp.pop %v327
        %v329 = vmul.f32 1.0, %v328
        %v330 = vadd.f32 %v329, 1.0
        %v331 = vlaneseq
        %v332 = vshrl.u32 %v331, 7
        %v333 = vsub.s32 0, %v332
        %v334 = vrot.slane %v330, %v333
        %336 = vbcast.lane.b32.xlu0 %v334, 256
        %v337 = vpop.permute.xlu0 %336
        %v340 = vunpack.c.l.s4 839922192
        %v341 = vunpack.c.0.s8 %v340
        %v342 = vlaneseq
        %v343 = vshrl.u32 %v342, 7
        %v344 = vsub.s32 %v341, %v343
        %v345 = vrot.slane %v337, %v344
        %v347 = vmul.f32 %v200, %v345
        %348 = vst [vmem:[%s199] sm:$0xff] %v347
        %s349 = sand.u32 %s97, 1
        %s350 = scalar_lea.sflag [#allocation4], %s349
        %s351 = sand.u32 %s97, 1
        %s352 = smul.addr %s351, 8
        %s353 = scalar_lea.vmem [#allocation7], %s352
        // Predicated region
        $region41: #{tpu_custom_call.1} parent=31 // pred_check
          %p354 = pneg %p107
        $region42: #{tpu_custom_call.1} parent=31 // pred_check_branch
          %356 = sbr.rel (%p354) target = $region44
        $region43: #{tpu_custom_call.1} parent=31 // pred_region
          %s358 = ssub.s32 128, 128
          %359 = vsyncadd %s350, %s358
          %s360 = smul.addr %s21, 2
          %s361 = smul.addr %s360, 64
          %s362 = scalar_lea.hbm %s3, %s361
          %s364 = sshll.u32 %s353, 4
          %s365 = int_to_ptr.vmem [resolvable:$true] %s364
          %367 = dma.vmem_to_hbm [thread:$0]  %s365, 128, %s362, %s350
        $region44: #{tpu_custom_call.1} parent=31 // pred_fallthru
          _
      $region32: #{tpu_custom_call.1} parent=5 // pred_fallthru
        _
      %p368 = scmp.le.s32.totalorder 2, %s16
      // Predicated region
      $region45: #{tpu_custom_call.1} parent=5 // pred_check
        %p369 = pneg %p368
      $region46: #{tpu_custom_call.1} parent=5 // pred_check_branch
        %371 = sbr.rel (%p369) target = $region48
      $region47: #{tpu_custom_call.1} parent=5 // pred_region
        %s372 = ssub.s32 %s16, 2
        // Predicated region
        $region49: #{tpu_custom_call.1} parent=47 // pred_check
          %p373 = pneg %p113
        $region50: #{tpu_custom_call.1} parent=47 // pred_check_branch
          %375 = sbr.rel (%p373) target = $region52
        $region51: #{tpu_custom_call.1} parent=47 // pred_region
          %s376 = sand.u32 %s98, 1
          %s377 = scalar_lea.sflag [#allocation4], %s376
          %s378 = sand.u32 %s98, 1
          %s379 = smul.addr %s378, 8
          %s380 = scalar_lea.vmem [#allocation7], %s379
          %381 = dma.done %s377, 128
        $region52: #{tpu_custom_call.1} parent=47 // pred_fallthru
          _
      $region48: #{tpu_custom_call.1} parent=5 // pred_fallthru
        _
    $region6: #{tpu_custom_call.1} parent=1 // loop_footer
      %s20 = sadd.s32 1, %s16
    $region7: #{tpu_custom_call.1} parent=1 // loop_footer_branch
      %15 = sbr.rel target = $region3
    $region8: #{tpu_custom_call.1} parent=1 // loop_exit
      _
    %382 = vsyncpa [#allocation3], 1
    %s383 = scalar_lea.sflag [#allocation3], 1
    %384 = vsyncpa %s383, 1
    %385 = vsyncpa [#allocation6], 1
    %386 = vsyncpa [#allocation4], 1
    %s387 = scalar_lea.sflag [#allocation4], 1
    %388 = vsyncpa %s387, 1

</llo_original>
